<compile_context>
chip_gen: v7x
topology: tpu7x:2x2x1
jax: 0.10.0
libtpu: 0.0.40
codegen_flags: <defaults>
</compile_context>

<pallas_src>
import jax
import jax.numpy as jnp
from jax.experimental import pallas as pl
from jax.experimental.pallas import tpu as pltpu

_SUBLANE = 8
_LANE = 128
_SMALL_BYTES = 2 * 1024 * 1024    # below this: single full-array block, no grid
_TILE_BYTES = 8 * 1024 * 1024     # streaming-copy tile (in+out, double-buffered -> 32 MiB)
_VMEM_LIMIT = 48 * 1024 * 1024    # under v7x's 64 MiB physical VMEM with headroom


# -----------------------------------------------------------------------------
# Primary path: aliased no-op (zero HBM traffic when x is donated).
# -----------------------------------------------------------------------------
def _alias_noop_kernel(x_ref, o_ref):
    # The output HBM buffer IS the input buffer (input_output_aliases={0: 0}),
    # so there is nothing to move.  touch() adds a fake read+write dependency
    # so the aliased output is considered produced by this kernel.
    del x_ref
    pltpu.touch(o_ref)


def _identity_alias_noop(x):
    return pl.pallas_call(
        _alias_noop_kernel,
        out_shape=jax.ShapeDtypeStruct(x.shape, x.dtype),
        in_specs=[pl.BlockSpec(memory_space=pl.ANY)],
        out_specs=pl.BlockSpec(memory_space=pl.ANY),
        input_output_aliases={0: 0},
        compiler_params=pltpu.CompilerParams(has_side_effects=True),
    )(x)


# -----------------------------------------------------------------------------
# Fallback path: lane-dense tiled streaming copy (no aliasing needed).
# -----------------------------------------------------------------------------
def _copy_kernel(x_ref, o_ref):
    o_ref[...] = x_ref[...]


def _identity_streaming_copy(x):
    orig_shape = x.shape
    total = x.size
    itemsize = jnp.dtype(x.dtype).itemsize

    # Flatten to a lane-dense 2D view; pad irregular element counts up to a
    # multiple of 8*128 so they stay on the tiled, unmasked-vst path instead of
    # one huge (possibly VMEM-busting) block.
    chunk = _SUBLANE * _LANE
    padded = pl.cdiv(total, chunk) * chunk
    flat = x.reshape(total)
    if padded != total:
        flat = jnp.pad(flat, (0, padded - total))
    lanes = next(l for l in (4096, 2048, 1024, 512, 256, 128) if padded % l == 0)
    rows = padded // lanes
    x2d = flat.reshape(rows, lanes)

    total_bytes = padded * itemsize
    if total_bytes <= _SMALL_BYTES:
        # Small tensor: single full-array block, one DMA in / one DMA out.
        out2d = pl.pallas_call(
            _copy_kernel,
            out_shape=jax.ShapeDtypeStruct(x2d.shape, x2d.dtype),
        )(x2d)
    else:
        row_bytes = lanes * itemsize
        block_rows = max(_SUBLANE, (_TILE_BYTES // row_bytes) // _SUBLANE * _SUBLANE)
        # v7x has 2 TensorCores: keep at least 2 "parallel" grid steps so both
        # cores (and their DMA issue bandwidth) are used.
        block_rows = min(block_rows, max(_SUBLANE, (rows // 2) // _SUBLANE * _SUBLANE))
        block_rows = min(block_rows, rows)
        spec = pl.BlockSpec((block_rows, lanes), lambda i: (i, 0))
        out2d = pl.pallas_call(
            _copy_kernel,
            out_shape=jax.ShapeDtypeStruct(x2d.shape, x2d.dtype),
            grid=(pl.cdiv(rows, block_rows),),
            in_specs=[spec],
            out_specs=spec,
            compiler_params=pltpu.CompilerParams(
                dimension_semantics=("parallel",),
                vmem_limit_bytes=_VMEM_LIMIT,
            ),
        )(x2d)

    out_flat = out2d.reshape(padded)
    if padded != total:
        out_flat = out_flat[:total]
    return out_flat.reshape(orig_shape)


# -----------------------------------------------------------------------------
# Public wrapper.
# -----------------------------------------------------------------------------
def identity_forward(x):
    """Pallas TPU implementation of Identity.forward (returns x unchanged).

    For true zero-copy, call through a donating jit, e.g.
        jax.jit(identity_forward, donate_argnums=0)
    so XLA does not insert a defensive copy of x ahead of the aliased call.
    """
    if x.size == 0:
        return x
    try:
        return _identity_alias_noop(x)
    except Exception:
        # Conservative fallback if the aliased no-op / ANY-space path cannot
        # lower on this toolchain: plain pipelined streaming copy.
        return _identity_streaming_copy(x)


# Donating entry point for callers that can give up x (zero HBM traffic).
identity_forward_donated = jax.jit(identity_forward, donate_argnums=0)


if __name__ == "__main__":
    key = jax.random.PRNGKey(0)
    x = jax.random.normal(key, (2, 4, 16, 16), dtype=jnp.float32)

    y = identity_forward(x)
    jax.block_until_ready(y)

    assert y.shape == x.shape
    assert y.dtype == x.dtype
    assert bool(jnp.all(y == x))
    print("KERNEL_OK")
</pallas_src>

<mosaic_0001>
module attributes {stable_mosaic.version = 11 : i64} {
  func.func @_alias_noop_kernel(%arg0: memref<2x4x16x16xf32, #tpu.memory_space<any>>, %arg1: memref<2x4x16x16xf32, #tpu.memory_space<any>>) attributes {dimension_semantics = [], scalar_prefetch = 0 : i64, scratch_operands = 0 : i64, tpu.core_type = #tpu.core_type<tc>} {
    return
  }
}

module attributes {stable_mosaic.version = 11 : i64} {
  func.func @_copy_kernel(%arg0: memref<1x2048xf32, #tpu.memory_space<vmem>>, %arg1: memref<1x2048xf32, #tpu.memory_space<vmem>>) attributes {dimension_semantics = [], scalar_prefetch = 0 : i64, scratch_operands = 0 : i64, tpu.core_type = #tpu.core_type<tc>} {
    %c0 = arith.constant 0 : index
    %c0_0 = arith.constant 0 : index
    %0 = vector.load %arg0[%c0, %c0_0] : memref<1x2048xf32, #tpu.memory_space<vmem>>, vector<1x2048xf32>
    %c0_1 = arith.constant 0 : index
    %c0_2 = arith.constant 0 : index
    %1 = vector.load %arg1[%c0_1, %c0_2] : memref<1x2048xf32, #tpu.memory_space<vmem>>, vector<1x2048xf32>
    tpu.vector_store %arg1[%c0_1, %c0_2], %0 {strides = array<i32>} : memref<1x2048xf32, #tpu.memory_space<vmem>>, vector<1x2048xf32>,
    return
  }
}

</mosaic_0001>

<llo_original>
// kernel: tpu_custom_call.1
$region0: #{tpu_custom_call.1}
  #allocation0 [shape = 'u32[]', space=smem, size = 0x4, offset = 0x4, fixed_abs, tag = 'smem constant byte address 0x4 - core index']
  #allocation1 [shape = 'u32[144,128]{1,0:T(1,128)}', space=vmem, size = 0x12000, scoped, tag = 'internal scratch']
  %s0 = inlined_call_operand.hbm [shape: f32[2,4,16,16], index: 0, kind: input, shape index: {}, may-alias: {0,1}]
  %s1 = inlined_call_operand.hbm [shape: f32[2,4,16,16], index: 1, kind: output, shape index: {}, may-alias: {0,1}]
  %s2 = sld [smem:[#allocation0]]
  $region2: #{tpu_custom_call.1} parent=0
    _
  %s4 = ssub.s32 1, %s2
  %s5 = scalar_select 0, %s4, %s2

// kernel: tpu_custom_call.1
$region0: #{tpu_custom_call.1}
  #allocation0 [shape = 'u32[]', space=smem, size = 0x4, offset = 0x4, fixed_abs, tag = 'smem constant byte address 0x4 - core index']
  #allocation1 [shape = 'u32[144,128]{1,0:T(1,128)}', space=vmem, size = 0x12000, scoped, tag = 'internal scratch']
  %s0 = inlined_call_operand.hbm [shape: f32[1,2048], index: 0, kind: input, shape index: {}]
  %s1 = inlined_call_operand.hbm [shape: f32[1,2048], index: 1, kind: output, shape index: {}]
  %s2 = sld [smem:[#allocation0]]
  $region18: #{tpu_custom_call.1} parent=0
    _
  %s4 = ssub.s32 1, %s2
  %s5 = scalar_select 0, %s4, %s2
  $region1: #{tpu_custom_call.1} parent=0
    #allocation2 [shape = 'u8[8192]{0}', space=vmem, size = 0x2000, scoped, tag = 'input window, operand 0, single buffered']
    #allocation3 [shape = 's32[1]{0}', space=sflag, size = 0x4, scoped, tag = 'scoped memory for tpu_custom_call.1']
    #allocation4 [shape = 's32[1]{0}', space=sflag, size = 0x4, scoped, tag = 'scoped memory for tpu_custom_call.1']
    #allocation5 [shape = 'u8[8192]{0}', space=vmem, size = 0x2000, scoped, tag = 'output window, operand 0, single buffered']
    %6 = vsyncpa [#allocation3], 0
    %7 = vsyncpa [#allocation4], 0
    // Predicated region
    $region2: #{tpu_custom_call.1} parent=1 // pred_check
      _
    $region3: #{tpu_custom_call.1} parent=1 // pred_check_branch
      %9 = sbr.rel (0) target = $region5
    $region4: #{tpu_custom_call.1} parent=1 // pred_region
      %s11 = ssub.s32 256, 256
      %12 = vsyncadd [#allocation3], %s11
      %s14 = sshll.u32 [#allocation2], 4
      %s15 = int_to_ptr.vmem [resolvable:$true] %s14
      %17 = dma.hbm_to_vmem [thread:$0]  %s0, 256, %s15, [#allocation3]
    $region5: #{tpu_custom_call.1} parent=1 // pred_fallthru
      _
    // Predicated region
    $region6: #{tpu_custom_call.1} parent=1 // pred_check
      _
    $region7: #{tpu_custom_call.1} parent=1 // pred_check_branch
      %19 = sbr.rel (0) target = $region9
    $region8: #{tpu_custom_call.1} parent=1 // pred_region
      %20 = dma.done [#allocation3], 256
    $region9: #{tpu_custom_call.1} parent=1 // pred_fallthru
      _
    %v21 = vld [vmem:[#allocation2] sm:$0xff]
    %v22 = vld [vmem:[#allocation2 + $0x8] sm:$0xff]
    %23 = vst [vmem:[#allocation5] sm:$0xff] %v21
    %24 = vst [vmem:[#allocation5 + $0x8] sm:$0xff] %v22
    // Predicated region
    $region10: #{tpu_custom_call.1} parent=1 // pred_check
      _
    $region11: #{tpu_custom_call.1} parent=1 // pred_check_branch
      %26 = sbr.rel (0) target = $region13
    $region12: #{tpu_custom_call.1} parent=1 // pred_region
      %s28 = ssub.s32 256, 256
      %29 = vsyncadd [#allocation4], %s28
      %s31 = sshll.u32 [#allocation5], 4
      %s32 = int_to_ptr.vmem [resolvable:$true] %s31
      %34 = dma.vmem_to_hbm [thread:$0]  %s32, 256, %s1, [#allocation4]
    $region13: #{tpu_custom_call.1} parent=1 // pred_fallthru
      _
    // Predicated region
    $region14: #{tpu_custom_call.1} parent=1 // pred_check
      _
    $region15: #{tpu_custom_call.1} parent=1 // pred_check_branch
      %36 = sbr.rel (0) target = $region17
    $region16: #{tpu_custom_call.1} parent=1 // pred_region
      %37 = dma.done [#allocation4], 256
    $region17: #{tpu_custom_call.1} parent=1 // pred_fallthru
      _
    %38 = vsyncpa [#allocation3], 1
    %39 = vsyncpa [#allocation4], 1

</llo_original>
